<compile_context>
chip_gen: v6e
topology: v6e:2x2x1
jax: 0.10.0
libtpu: 0.0.40
codegen_flags: <defaults>
</compile_context>

<pallas_src>
import jax
import jax.numpy as jnp
from jax.experimental import pallas as pl
from jax.experimental.pallas import tpu as pltpu


def _mlp_kernel(x_ref, w1_ref, b1_ref, w2_ref, b2_ref, o_ref):
    # ---- Linear(in_dim, 64) + bias + ReLU (MXU + VPU, fused) ----
    h = jnp.dot(x_ref[...], w1_ref[...], preferred_element_type=jnp.float32)
    h = jnp.maximum(h + b1_ref[...], 0.0)          # b1_ref is [1, 64], broadcasts over rows
    # (Dropout is identity at inference.)
    # ---- Linear(64, 128) + bias + ReLU ----
    y = jnp.dot(h, w2_ref[...], preferred_element_type=jnp.float32)
    y = jnp.maximum(y + b2_ref[...], 0.0)          # b2_ref is [1, 128]
    o_ref[...] = y.astype(o_ref.dtype)


def _cdiv(a, b):
    return (a + b - 1) // b


def _round_up(a, b):
    return _cdiv(a, b) * b


def tabular_model_forward(x, w1, b1, w2, b2, *, block_b=4096, out_dtype=jnp.float32):
    """x: [B, in_dim] float32 -> [B, 128] `out_dtype`.

    Weights are stored as [in_features, out_features] so the kernel computes x @ W + b.
    block_b: max batch-tile rows (multiple of 8). 4096-row tiles (~2.3 MiB of HBM
    traffic per grid step, ~10-11 MiB of VMEM with double buffering) are near the
    HBM roofline on v5e/v6e/v7x while fitting every generation's VMEM budget.
    """
    B, in_dim = x.shape
    h1 = w1.shape[1]   # 64
    h2 = w2.shape[1]   # 128

    # Biases as [1, N] rows (metadata-only reshape, no per-call pad/scatter).
    b1r = b1.reshape(1, h1)
    b2r = b2.reshape(1, h2)

    # Batch tile: sublane-aligned (multiple of 8), capped so the grid keeps >=~4
    # steps when B is large (lets the "parallel" axis split across both TCs on v7x).
    TB = max(8, min(block_b, _round_up(_cdiv(B, 4), 8)))
    grid = (pl.cdiv(B, TB),)   # ragged last block handled by Pallas store masking

    out_itemsize = jnp.dtype(out_dtype).itemsize
    flops = 2 * B * (in_dim * h1 + h1 * h2)
    bytes_accessed = (4 * (B * in_dim + in_dim * h1 + h1 + h1 * h2 + h2)
                      + out_itemsize * B * h2)

    return pl.pallas_call(
        _mlp_kernel,
        out_shape=jax.ShapeDtypeStruct((B, h2), out_dtype),
        grid_spec=pl.GridSpec(
            grid=grid,
            in_specs=[
                pl.BlockSpec((TB, in_dim), lambda i: (i, 0)),   # x: tiled over batch
                pl.BlockSpec((in_dim, h1), lambda i: (0, 0)),   # W1: resident (full array)
                pl.BlockSpec((1, h1), lambda i: (0, 0)),        # b1: resident
                pl.BlockSpec((h1, h2), lambda i: (0, 0)),       # W2: resident
                pl.BlockSpec((1, h2), lambda i: (0, 0)),        # b2: resident
            ],
            out_specs=pl.BlockSpec((TB, h2), lambda i: (i, 0)),
        ),
        compiler_params=pltpu.CompilerParams(
            dimension_semantics=("parallel",),
            vmem_limit_bytes=32 << 20,   # covers v5e's 16 MiB default; <= v7x physical
        ),
        cost_estimate=pl.CostEstimate(
            flops=flops, transcendentals=0, bytes_accessed=bytes_accessed),
    )(x, w1, b1r, w2, b2r)


def init_params(key, in_dim=5):
    """Deterministic synthetic parameters matching nn.Linear shapes.

    PyTorch stores Linear weight as [out, in]; we keep [in, out] (already
    transposed) so the kernel computes x @ W directly.
    """
    k1, k2, k3, k4 = jax.random.split(key, 4)
    bound1 = 1.0 / jnp.sqrt(in_dim)
    bound2 = 1.0 / jnp.sqrt(64.0)
    w1 = jax.random.uniform(k1, (in_dim, 64), jnp.float32, -bound1, bound1)
    b1 = jax.random.uniform(k2, (64,), jnp.float32, -bound1, bound1)
    w2 = jax.random.uniform(k3, (64, 128), jnp.float32, -bound2, bound2)
    b2 = jax.random.uniform(k4, (128,), jnp.float32, -bound2, bound2)
    return w1, b1, w2, b2


def _reference(x, w1, b1, w2, b2):
    h = jnp.maximum(x @ w1 + b1, 0.0)
    return jnp.maximum(h @ w2 + b2, 0.0)


if __name__ == "__main__":
    key = jax.random.PRNGKey(0)
    kx, kp = jax.random.split(key)

    in_dim = 5
    w1, b1, w2, b2 = init_params(kp, in_dim=in_dim)

    # Small, sublane-aligned batch.
    B = 8
    x = jax.random.normal(kx, (B, in_dim), jnp.float32)
    out = jax.block_until_ready(tabular_model_forward(x, w1, b1, w2, b2))
    ref = _reference(x, w1, b1, w2, b2)
    assert out.shape == (B, 128), out.shape
    assert jnp.allclose(out, ref, atol=1e-5, rtol=1e-5), "mismatch vs reference (B=8)"

    # Ragged batch exercises the unpadded / masked-last-block path (grid of 3 tiles).
    B2 = 37
    x2 = jax.random.normal(kx, (B2, in_dim), jnp.float32)
    out2 = jax.block_until_ready(tabular_model_forward(x2, w1, b1, w2, b2))
    ref2 = _reference(x2, w1, b1, w2, b2)
    assert out2.shape == (B2, 128), out2.shape
    assert jnp.allclose(out2, ref2, atol=1e-5, rtol=1e-5), "mismatch vs reference (B=37)"

    # Optional bf16-output path (halves the dominant writeback stream).
    out3 = jax.block_until_ready(
        tabular_model_forward(x2, w1, b1, w2, b2, out_dtype=jnp.bfloat16))
    assert out3.shape == (B2, 128) and out3.dtype == jnp.bfloat16
    assert jnp.allclose(out3.astype(jnp.float32), ref2, atol=3e-2, rtol=3e-2), \
        "mismatch vs reference (bf16 output)"

    print("KERNEL_OK")
</pallas_src>

<mosaic_0001>
module attributes {stable_mosaic.version = 11 : i64} {
  func.func @_mlp_kernel(%arg0: i32, %arg1: memref<8x5xf32, #tpu.memory_space<vmem>>, %arg2: memref<5x64xf32, #tpu.memory_space<vmem>>, %arg3: memref<1x64xf32, #tpu.memory_space<vmem>>, %arg4: memref<64x128xf32, #tpu.memory_space<vmem>>, %arg5: memref<1x128xf32, #tpu.memory_space<vmem>>, %arg6: memref<8x128xf32, #tpu.memory_space<vmem>>) attributes {dimension_semantics = [#tpu.dimension_semantics<parallel>], iteration_bounds = array<i64: 1>, scalar_prefetch = 0 : i64, scratch_operands = 0 : i64, tpu.core_type = #tpu.core_type<tc>, window_params = [{transform_indices = @transform_0, window_bounds = array<i64: 8, 5>}, {pipeline_mode = #tpu.pipeline_mode<synchronous>, transform_indices = @transform_1, window_bounds = array<i64: 5, 64>}, {pipeline_mode = #tpu.pipeline_mode<synchronous>, transform_indices = @transform_2, window_bounds = array<i64: 1, 64>}, {pipeline_mode = #tpu.pipeline_mode<synchronous>, transform_indices = @transform_3, window_bounds = array<i64: 64, 128>}, {pipeline_mode = #tpu.pipeline_mode<synchronous>, transform_indices = @transform_4, window_bounds = array<i64: 1, 128>}, {transform_indices = @transform_5, window_bounds = array<i64: 8, 128>}]} {
    %c0 = arith.constant 0 : index
    %c0_0 = arith.constant 0 : index
    %0 = vector.load %arg1[%c0, %c0_0] : memref<8x5xf32, #tpu.memory_space<vmem>>, vector<8x5xf32>
    %c0_1 = arith.constant 0 : index
    %c0_2 = arith.constant 0 : index
    %1 = vector.load %arg2[%c0_1, %c0_2] : memref<5x64xf32, #tpu.memory_space<vmem>>, vector<5x64xf32>
    %cst = arith.constant dense<0.000000e+00> : vector<8x64xf32>
    %2 = tpu.matmul %0, %1, %cst {dimension_numbers = #tpu.dot_dimension_numbers<[1], [0], [0], [1], [0, 0, 1, 1], [], []>} : vector<8x5xf32>, vector<5x64xf32>, vector<8x64xf32> -> vector<8x64xf32>
    %c0_3 = arith.constant 0 : index
    %c0_4 = arith.constant 0 : index
    %3 = vector.load %arg3[%c0_3, %c0_4] : memref<1x64xf32, #tpu.memory_space<vmem>>, vector<1x64xf32>
    %4 = vector.broadcast %3 : vector<1x64xf32> to vector<8x64xf32>
    %5 = arith.addf %2, %4 : vector<8x64xf32>
    %cst_5 = arith.constant 0.000000e+00 : f32
    %6 = vector.broadcast %cst_5 : f32 to vector<8x64xf32>
    %7 = arith.maximumf %5, %6 : vector<8x64xf32>
    %c0_6 = arith.constant 0 : index
    %c0_7 = arith.constant 0 : index
    %8 = vector.load %arg4[%c0_6, %c0_7] : memref<64x128xf32, #tpu.memory_space<vmem>>, vector<64x128xf32>
    %cst_8 = arith.constant dense<0.000000e+00> : vector<8x128xf32>
    %9 = tpu.matmul %7, %8, %cst_8 {dimension_numbers = #tpu.dot_dimension_numbers<[1], [0], [0], [1], [0, 0, 1, 1], [], []>} : vector<8x64xf32>, vector<64x128xf32>, vector<8x128xf32> -> vector<8x128xf32>
    %c0_9 = arith.constant 0 : index
    %c0_10 = arith.constant 0 : index
    %10 = vector.load %arg5[%c0_9, %c0_10] : memref<1x128xf32, #tpu.memory_space<vmem>>, vector<1x128xf32>
    %11 = vector.broadcast %10 : vector<1x128xf32> to vector<8x128xf32>
    %12 = arith.addf %9, %11 : vector<8x128xf32>
    %cst_11 = arith.constant 0.000000e+00 : f32
    %13 = vector.broadcast %cst_11 : f32 to vector<8x128xf32>
    %14 = arith.maximumf %12, %13 : vector<8x128xf32>
    %c0_12 = arith.constant 0 : index
    %c0_13 = arith.constant 0 : index
    %15 = vector.load %arg6[%c0_12, %c0_13] : memref<8x128xf32, #tpu.memory_space<vmem>>, vector<8x128xf32>
    tpu.vector_store %arg6[%c0_12, %c0_13], %14 {strides = array<i32>} : memref<8x128xf32, #tpu.memory_space<vmem>>, vector<8x128xf32>,
    return
  }
  func.func @transform_0(%arg0: i32) -> (i32, i32) {
    %c0_i32 = arith.constant 0 : i32
    %c0_i32_0 = arith.constant 0 : i32
    return %arg0, %c0_i32 : i32, i32
  }
  func.func @transform_1(%arg0: i32) -> (i32, i32) {
    %c0_i32 = arith.constant 0 : i32
    %c0_i32_0 = arith.constant 0 : i32
    %c0_i32_1 = arith.constant 0 : i32
    return %c0_i32, %c0_i32_0 : i32, i32
  }
  func.func @transform_2(%arg0: i32) -> (i32, i32) {
    %c0_i32 = arith.constant 0 : i32
    %c0_i32_0 = arith.constant 0 : i32
    %c0_i32_1 = arith.constant 0 : i32
    return %c0_i32, %c0_i32_0 : i32, i32
  }
  func.func @transform_3(%arg0: i32) -> (i32, i32) {
    %c0_i32 = arith.constant 0 : i32
    %c0_i32_0 = arith.constant 0 : i32
    %c0_i32_1 = arith.constant 0 : i32
    return %c0_i32, %c0_i32_0 : i32, i32
  }
  func.func @transform_4(%arg0: i32) -> (i32, i32) {
    %c0_i32 = arith.constant 0 : i32
    %c0_i32_0 = arith.constant 0 : i32
    %c0_i32_1 = arith.constant 0 : i32
    return %c0_i32, %c0_i32_0 : i32, i32
  }
  func.func @transform_5(%arg0: i32) -> (i32, i32) {
    %c0_i32 = arith.constant 0 : i32
    %c0_i32_0 = arith.constant 0 : i32
    return %arg0, %c0_i32 : i32, i32
  }
}

</mosaic_0001>

<llo_original>
// kernel: tpu_custom_call.1
$region0: #{tpu_custom_call.1}
  #allocation0 [shape = 'u32[]', space=smem, size = 0x4, offset = 0x4, fixed_abs, tag = 'smem constant byte address 0x4 - core index']
  #allocation1 [shape = 'u32[144,128]{1,0:T(1,128)}', space=vmem, size = 0x12000, scoped, tag = 'internal scratch']
  %s0 = inlined_call_operand.hbm [shape: f32[8,5], index: 0, kind: input, shape index: {}]
  %s1 = inlined_call_operand.hbm [shape: f32[5,64], index: 1, kind: input, shape index: {}]
  %s2 = inlined_call_operand.vmem [shape: f32[1,64], index: 2, kind: input, shape index: {}]
  %s3 = inlined_call_operand.hbm [shape: f32[64,128], index: 3, kind: input, shape index: {}]
  %s4 = inlined_call_operand.vmem [shape: f32[1,128], index: 4, kind: input, shape index: {}]
  %s5 = inlined_call_operand.hbm [shape: f32[8,128], index: 5, kind: output, shape index: {}]
  %s6 = sld [smem:[#allocation0]]
  $region42: #{tpu_custom_call.1} parent=0
    _
  %s8 = ssub.s32 1, %s6
  %s9 = scalar_select 0, %s8, %s6
  $region1: #{tpu_custom_call.1} parent=0
    #allocation2 [shape = 'u8[4096]{0}', space=vmem, size = 0x1000, scoped, tag = 'input window, operand 0, single buffered']
    #allocation3 [shape = 's32[1]{0}', space=sflag, size = 0x4, scoped, tag = 'scoped memory for tpu_custom_call.1']
    #allocation4 [shape = 's32[1]{0}', space=sflag, size = 0x4, scoped, tag = 'scoped memory for tpu_custom_call.1']
    #allocation5 [shape = 'u8[4096]{0}', space=vmem, size = 0x1000, scoped, tag = 'input window, operand 1, single buffered']
    #allocation6 [shape = 's32[1]{0}', space=sflag, size = 0x4, scoped, tag = 'scoped memory for tpu_custom_call.1']
    #allocation7 [shape = 'u8[32768]{0}', space=vmem, size = 0x8000, scoped, tag = 'input window, operand 3, single buffered']
    #allocation8 [shape = 'u8[4096]{0}', space=vmem, size = 0x1000, scoped, tag = 'output window, operand 0, single buffered']
    %10 = vsyncpa [#allocation3], 0
    %11 = vsyncpa [#allocation6], 0
    %12 = vsyncpa [#allocation4], 0
    // Predicated region
    $region2: #{tpu_custom_call.1} parent=1 // pred_check
      _
    $region3: #{tpu_custom_call.1} parent=1 // pred_check_branch
      %14 = sbr.rel (0) target = $region5
    $region4: #{tpu_custom_call.1} parent=1 // pred_region
      %s16 = ssub.s32 128, 128
      %17 = vsyncadd [#allocation3], %s16
      %s19 = sshll.u32 [#allocation2], 4
      %s20 = int_to_ptr.vmem [resolvable:$true] %s19
      %22 = dma.hbm_to_vmem [thread:$0]  %s0, 128, %s20, [#allocation3]
    $region5: #{tpu_custom_call.1} parent=1 // pred_fallthru
      _
    // Predicated region
    $region6: #{tpu_custom_call.1} parent=1 // pred_check
      _
    $region7: #{tpu_custom_call.1} parent=1 // pred_check_branch
      %24 = sbr.rel (0) target = $region9
    $region8: #{tpu_custom_call.1} parent=1 // pred_region
      %s26 = ssub.s32 128, 128
      %27 = vsyncadd [#allocation6], %s26
      %s29 = sshll.u32 [#allocation5], 4
      %s30 = int_to_ptr.vmem [resolvable:$true] %s29
      %32 = dma.hbm_to_vmem [thread:$0]  %s1, 128, %s30, [#allocation6]
    $region9: #{tpu_custom_call.1} parent=1 // pred_fallthru
      _
    // Predicated region
    $region10: #{tpu_custom_call.1} parent=1 // pred_check
      _
    $region11: #{tpu_custom_call.1} parent=1 // pred_check_branch
      %34 = sbr.rel (0) target = $region13
    $region12: #{tpu_custom_call.1} parent=1 // pred_region
      _
    $region13: #{tpu_custom_call.1} parent=1 // pred_fallthru
      _
    // Predicated region
    $region14: #{tpu_custom_call.1} parent=1 // pred_check
      _
    $region15: #{tpu_custom_call.1} parent=1 // pred_check_branch
      %36 = sbr.rel (0) target = $region17
    $region16: #{tpu_custom_call.1} parent=1 // pred_region
      %s38 = ssub.s32 1024, 1024
      %39 = vsyncadd [#allocation6], %s38
      %s40 = sshll.u32 [#allocation7], 4
      %s41 = int_to_ptr.vmem [resolvable:$true] %s40
      %46 = dma.hbm_to_vmem [thread:$0]  %s3, 1024, %s41, [#allocation6], 128, 128, 8
    $region17: #{tpu_custom_call.1} parent=1 // pred_fallthru
      _
    // Predicated region
    $region18: #{tpu_custom_call.1} parent=1 // pred_check
      _
    $region19: #{tpu_custom_call.1} parent=1 // pred_check_branch
      %48 = sbr.rel (0) target = $region21
    $region20: #{tpu_custom_call.1} parent=1 // pred_region
      _
    $region21: #{tpu_custom_call.1} parent=1 // pred_fallthru
      _
    // Predicated region
    $region22: #{tpu_custom_call.1} parent=1 // pred_check
      _
    $region23: #{tpu_custom_call.1} parent=1 // pred_check_branch
      %50 = sbr.rel (0) target = $region25
    $region24: #{tpu_custom_call.1} parent=1 // pred_region
      %51 = dma.done [#allocation3], 128
    $region25: #{tpu_custom_call.1} parent=1 // pred_fallthru
      _
    // Predicated region
    $region26: #{tpu_custom_call.1} parent=1 // pred_check
      _
    $region27: #{tpu_custom_call.1} parent=1 // pred_check_branch
      %53 = sbr.rel (0) target = $region29
    $region28: #{tpu_custom_call.1} parent=1 // pred_region
      %54 = dma.done [#allocation6], 128
    $region29: #{tpu_custom_call.1} parent=1 // pred_fallthru
      _
    // Predicated region
    $region30: #{tpu_custom_call.1} parent=1 // pred_check
      _
    $region31: #{tpu_custom_call.1} parent=1 // pred_check_branch
      %56 = sbr.rel (0) target = $region33
    $region32: #{tpu_custom_call.1} parent=1 // pred_region
      %57 = dma.done [#allocation6], 1024
    $region33: #{tpu_custom_call.1} parent=1 // pred_fallthru
      _
    %v58 = vld [vmem:[#allocation2] sm:$0xff]
    %v59 = vld [vmem:[#allocation5] sm:$0x1f]
    %v60 = vld [vmem:[%s2] sm:$0x1]
    %v62 = vlaneseq
    %v63 = vshrl.u32 %v62, 7
    %v64 = vsub.s32 0, %v63
    %v65 = vrot.slane %v60, %v64
    %vm67 = vcmask 39936
    %v69 = vsel %vm67, %v58, 0
    %vm71 = vcmask 1044480
    %v73 = vsel %vm71, %v59, 0
    %75 = vmatprep.subr.mxu0 0.0
    %76 = vmatpush1.msra.mxu0 0.0
    %77 = vmatprep.subr.mxu0 0.0
    %78 = vmatpush1.msra.mxu0 0.0
    %79 = vmatprep.subr.mxu0 0.0
    %80 = vmatpush1.msra.mxu0 0.0
    %81 = vmatprep.subr.mxu0 0.0
    %82 = vmatpush1.msra.mxu0 0.0
    %83 = vmatprep.subr.mxu0 0.0
    %84 = vmatpush1.msra.mxu0 0.0
    %85 = vmatprep.subr.mxu0 0.0
    %86 = vmatpush1.msra.mxu0 0.0
    %87 = vmatprep.subr.mxu0 0.0
    %88 = vmatpush1.msra.mxu0 0.0
    %89 = vmatprep.subr.mxu0 0.0
    %90 = vmatpush1.msra.mxu0 0.0
    %91 = vmatprep.subr.mxu0 0.0
    %92 = vmatpush1.msra.mxu0 0.0
    %93 = vmatprep.subr.mxu0 0.0
    %94 = vmatpush1.msra.mxu0 0.0
    %95 = vmatprep.subr.mxu0 0.0
    %96 = vmatpush1.msra.mxu0 0.0
    %97 = vmatprep.subr.mxu0 0.0
    %98 = vmatpush1.msra.mxu0 0.0
    %99 = vmatprep.subr.mxu0 0.0
    %100 = vmatpush1.msra.mxu0 0.0
    %101 = vmatprep.subr.mxu0 0.0
    %102 = vmatpush1.msra.mxu0 0.0
    %103 = vmatprep.subr.mxu0 0.0
    %104 = vmatpush1.msra.mxu0 0.0
    %105 = vmatprep.subr.mxu0 0.0
    %106 = vmatpush1.msra.mxu0 %v73
    %107 = vmatprep.subr.mxu0 0.0
    %108 = vmatpush2.msra.mxu0 0.0
    %109 = vmatprep.subr.mxu0 0.0
    %110 = vmatpush2.msra.mxu0 0.0
    %111 = vmatprep.subr.mxu0 0.0
    %112 = vmatpush2.msra.mxu0 0.0
    %113 = vmatprep.subr.mxu0 0.0
    %114 = vmatpush2.msra.mxu0 0.0
    %115 = vmatprep.subr.mxu0 0.0
    %116 = vmatpush2.msra.mxu0 0.0
    %117 = vmatprep.subr.mxu0 0.0
    %118 = vmatpush2.msra.mxu0 0.0
    %119 = vmatprep.subr.mxu0 0.0
    %120 = vmatpush2.msra.mxu0 0.0
    %121 = vmatprep.subr.mxu0 0.0
    %122 = vmatpush2.msra.mxu0 0.0
    %123 = vmatprep.subr.mxu0 0.0
    %124 = vmatpush2.msra.mxu0 0.0
    %125 = vmatprep.subr.mxu0 0.0
    %126 = vmatpush2.msra.mxu0 0.0
    %127 = vmatprep.subr.mxu0 0.0
    %128 = vmatpush2.msra.mxu0 0.0
    %129 = vmatprep.subr.mxu0 0.0
    %130 = vmatpush2.msra.mxu0 0.0
    %131 = vmatprep.subr.mxu0 0.0
    %132 = vmatpush2.msra.mxu0 0.0
    %133 = vmatprep.subr.mxu0 0.0
    %134 = vmatpush2.msra.mxu0 0.0
    %135 = vmatprep.subr.mxu0 0.0
    %136 = vmatpush2.msra.mxu0 0.0
    %137 = vmatprep.subr.mxu0 0.0
    %138 = vmatpush2.msra.mxu0 0.0
    %139 = vmatprep.mubr.f32.mxu0 0.0
    %140 = vmatmul.mubr.f32.gmra.mxu0 %v69
    %v141 = vpop.f32.mrf.mxu0
    %v142 = vadd.f32 %v65, %v141
    %v143 = vpop.f32.mrf.mxu0
    %144 = vdwg.mxu0
    %v145 = vmax.f32 %v142, 0.0
    %v146 = vld [vmem:[#allocation7] sm:$0xff]
    %v147 = vld [vmem:[#allocation7 + $0x8] sm:$0xff]
    %v148 = vld [vmem:[#allocation7 + $0x10] sm:$0xff]
    %v149 = vld [vmem:[#allocation7 + $0x18] sm:$0xff]
    %v150 = vld [vmem:[#allocation7 + $0x20] sm:$0xff]
    %v151 = vld [vmem:[#allocation7 + $0x28] sm:$0xff]
    %v152 = vld [vmem:[#allocation7 + $0x30] sm:$0xff]
    %v153 = vld [vmem:[#allocation7 + $0x38] sm:$0xff]
    %v154 = vld [vmem:[%s4] sm:$0x1]
    %v156 = vlaneseq
    %v157 = vshrl.u32 %v156, 7
    %v158 = vsub.s32 0, %v157
    %v159 = vrot.slane %v154, %v158
    %vm161 = vcmask 523264
    %v163 = vsel %vm161, %v145, 0
    %165 = vmatprep.subr.mxu0 0.0
    %166 = vmatpush1.msra.mxu0 0.0
    %167 = vmatprep.subr.mxu0 0.0
    %168 = vmatpush1.msra.mxu0 0.0
    %169 = vmatprep.subr.mxu0 0.0
    %170 = vmatpush1.msra.mxu0 0.0
    %171 = vmatprep.subr.mxu0 0.0
    %172 = vmatpush1.msra.mxu0 0.0
    %173 = vmatprep.subr.mxu0 0.0
    %174 = vmatpush1.msra.mxu0 0.0
    %175 = vmatprep.subr.mxu0 0.0
    %176 = vmatpush1.msra.mxu0 0.0
    %177 = vmatprep.subr.mxu0 0.0
    %178 = vmatpush1.msra.mxu0 0.0
    %179 = vmatprep.subr.mxu0 0.0
    %180 = vmatpush1.msra.mxu0 0.0
    %181 = vmatprep.subr.mxu0 0.0
    %182 = vmatpush1.msra.mxu0 %v153
    %183 = vmatprep.subr.mxu0 0.0
    %184 = vmatpush1.msra.mxu0 %v152
    %185 = vmatprep.subr.mxu0 0.0
    %186 = vmatpush1.msra.mxu0 %v151
    %187 = vmatprep.subr.mxu0 0.0
    %188 = vmatpush1.msra.mxu0 %v150
    %189 = vmatprep.subr.mxu0 0.0
    %190 = vmatpush1.msra.mxu0 %v149
    %191 = vmatprep.subr.mxu0 0.0
    %192 = vmatpush1.msra.mxu0 %v148
    %193 = vmatprep.subr.mxu0 0.0
    %194 = vmatpush1.msra.mxu0 %v147
    %195 = vmatprep.subr.mxu0 0.0
    %196 = vmatpush1.msra.mxu0 %v146
    %197 = vmatprep.subr.mxu0 0.0
    %198 = vmatpush2.msra.mxu0 0.0
    %199 = vmatprep.subr.mxu0 0.0
    %200 = vmatpush2.msra.mxu0 0.0
    %201 = vmatprep.subr.mxu0 0.0
    %202 = vmatpush2.msra.mxu0 0.0
    %203 = vmatprep.subr.mxu0 0.0
    %204 = vmatpush2.msra.mxu0 0.0
    %205 = vmatprep.subr.mxu0 0.0
    %206 = vmatpush2.msra.mxu0 0.0
    %207 = vmatprep.subr.mxu0 0.0
    %208 = vmatpush2.msra.mxu0 0.0
    %209 = vmatprep.subr.mxu0 0.0
    %210 = vmatpush2.msra.mxu0 0.0
    %211 = vmatprep.subr.mxu0 0.0
    %212 = vmatpush2.msra.mxu0 0.0
    %213 = vmatprep.subr.mxu0 0.0
    %214 = vmatpush2.msra.mxu0 0.0
    %215 = vmatprep.subr.mxu0 0.0
    %216 = vmatpush2.msra.mxu0 0.0
    %217 = vmatprep.subr.mxu0 0.0
    %218 = vmatpush2.msra.mxu0 0.0
    %219 = vmatprep.subr.mxu0 0.0
    %220 = vmatpush2.msra.mxu0 0.0
    %221 = vmatprep.subr.mxu0 0.0
    %222 = vmatpush2.msra.mxu0 0.0
    %223 = vmatprep.subr.mxu0 0.0
    %224 = vmatpush2.msra.mxu0 0.0
    %225 = vmatprep.subr.mxu0 0.0
    %226 = vmatpush2.msra.mxu0 0.0
    %227 = vmatprep.subr.mxu0 0.0
    %228 = vmatpush2.msra.mxu0 0.0
    %229 = vmatprep.mubr.f32.mxu0 0.0
    %230 = vmatmul.mubr.f32.gmra.mxu0 %v163
    %v231 = vpop.f32.mrf.mxu0
    %v232 = vadd.f32 %v159, %v231
    %v233 = vpop.f32.mrf.mxu0
    %234 = vdwg.mxu0
    %v235 = vmax.f32 %v232, 0.0
    %236 = vst [vmem:[#allocation8] sm:$0xff] %v235
    // Predicated region
    $region34: #{tpu_custom_call.1} parent=1 // pred_check
      _
    $region35: #{tpu_custom_call.1} parent=1 // pred_check_branch
      %238 = sbr.rel (0) target = $region37
    $region36: #{tpu_custom_call.1} parent=1 // pred_region
      %s240 = ssub.s32 128, 128
      %241 = vsyncadd [#allocation4], %s240
      %s243 = sshll.u32 [#allocation8], 4
      %s244 = int_to_ptr.vmem [resolvable:$true] %s243
      %246 = dma.vmem_to_hbm [thread:$0]  %s244, 128, %s5, [#allocation4]
    $region37: #{tpu_custom_call.1} parent=1 // pred_fallthru
      _
    // Predicated region
    $region38: #{tpu_custom_call.1} parent=1 // pred_check
      _
    $region39: #{tpu_custom_call.1} parent=1 // pred_check_branch
      %248 = sbr.rel (0) target = $region41
    $region40: #{tpu_custom_call.1} parent=1 // pred_region
      %249 = dma.done [#allocation4], 128
    $region41: #{tpu_custom_call.1} parent=1 // pred_fallthru
      _
    %250 = vsyncpa [#allocation3], 1
    %251 = vsyncpa [#allocation6], 1
    %252 = vsyncpa [#allocation4], 1

</llo_original>
